<compile_context>
chip_gen: v5e
topology: v5e:2x2
jax: 0.10.0
libtpu: 0.0.40
codegen_flags: <defaults>
</compile_context>

<pallas_src>
import jax
import jax.numpy as jnp
from jax.experimental import pallas as pl
from jax.experimental.pallas import tpu as pltpu

LANE = 128


def _round_up(n, m):
    return ((n + m - 1) // m) * m


def _mlp_kernel(x_ref, w1_ref, b1_ref, w2_ref, b2_ref, w3_ref, b3_ref, o_ref):
    # Hoist bias reads (single broadcast each; no per-tile re-broadcast filler).
    b1 = b1_ref[...]
    b2 = b2_ref[...]
    b3 = b3_ref[...]

    # fc1 + ReLU   (K -> 128 lanes, padded columns are exact zeros)
    h1 = jnp.dot(x_ref[...], w1_ref[...], preferred_element_type=jnp.float32)
    h1 = jnp.maximum(h1 + b1, 0.0)

    # fc2 + ReLU   (128 -> 128 lanes)
    h2 = jnp.dot(h1.astype(w2_ref.dtype), w2_ref[...],
                 preferred_element_type=jnp.float32)
    h2 = jnp.maximum(h2 + b2, 0.0)

    # fc3 logits   (128 -> 128 lanes, lane-dense store)
    out = jnp.dot(h2.astype(w3_ref.dtype), w3_ref[...],
                  preferred_element_type=jnp.float32)
    o_ref[...] = (out + b3).astype(o_ref.dtype)


def simple_nn_forward(x, w1, b1, w2, b2, w3, b3, *, block_b=256):
    """x: [B, input_size] f32.  Returns logits [B, num_classes] f32."""
    B, K = x.shape
    h1_dim, h2_dim = w1.shape[1], w2.shape[1]
    num_classes = w3.shape[1]

    # --- Lane-pad hidden / output widths to 128 (zero columns & rows). ---
    H1 = _round_up(h1_dim, LANE)
    H2 = _round_up(h2_dim, LANE)
    C = _round_up(num_classes, LANE)

    w1p = jnp.pad(w1, ((0, 0), (0, H1 - h1_dim)))
    b1p = jnp.pad(b1.reshape(1, -1), ((0, 0), (0, H1 - h1_dim)))
    w2p = jnp.pad(w2, ((0, H1 - h1_dim), (0, H2 - h2_dim)))
    b2p = jnp.pad(b2.reshape(1, -1), ((0, 0), (0, H2 - h2_dim)))
    w3p = jnp.pad(w3, ((0, H2 - h2_dim), (0, C - num_classes)))
    b3p = jnp.pad(b3.reshape(1, -1), ((0, 0), (0, C - num_classes)))

    # --- Batch grid: stream x/out tiles, keep weights resident in VMEM. ---
    tb = min(block_b, _round_up(B, 8))          # small B -> single (8-aligned) tile
    Bp = _round_up(B, tb)
    xp = jnp.pad(x, ((0, Bp - B), (0, 0)))
    grid = (Bp // tb,)

    def resident(shape):
        # Same block every grid step -> loaded once, stays in VMEM.
        return pl.BlockSpec(shape, lambda i: (0,) * len(shape))

    out = pl.pallas_call(
        _mlp_kernel,
        out_shape=jax.ShapeDtypeStruct((Bp, C), jnp.float32),
        grid=grid,
        in_specs=[
            pl.BlockSpec((tb, K), lambda i: (i, 0)),      # x: tiled over batch
            resident(w1p.shape), resident(b1p.shape),
            resident(w2p.shape), resident(b2p.shape),
            resident(w3p.shape), resident(b3p.shape),
        ],
        out_specs=pl.BlockSpec((tb, C), lambda i: (i, 0)),  # lane-dense [tb,128]
        compiler_params=pltpu.CompilerParams(
            dimension_semantics=("parallel",),   # batch tiles are independent
            vmem_limit_bytes=64 * 1024 * 1024,   # fits v7x's smaller VMEM too
        ),
    )(xp, w1p, b1p, w2p, b2p, w3p, b3p)

    # Slice padded batch rows and padded class columns back off.
    return out[:B, :num_classes]


def init_params(key, input_size, num_classes):
    """Deterministic synthetic parameters (same shapes as the PyTorch module)."""
    ks = jax.random.split(key, 6)

    def linear(kw, kb, fan_in, fan_out):
        bound = 1.0 / jnp.sqrt(fan_in)
        w = jax.random.uniform(kw, (fan_in, fan_out), jnp.float32, -bound, bound)
        b = jax.random.uniform(kb, (1, fan_out), jnp.float32, -bound, bound)
        return w, b

    w1, b1 = linear(ks[0], ks[1], input_size, 64)
    w2, b2 = linear(ks[2], ks[3], 64, 32)
    w3, b3 = linear(ks[4], ks[5], 32, num_classes)
    return w1, b1, w2, b2, w3, b3


if __name__ == "__main__":
    key = jax.random.PRNGKey(0)
    k_x, k_p = jax.random.split(key)

    batch = 8
    input_size = 32   # stand-in for X_train.shape[1]
    num_classes = 8   # stand-in for len(set(y))

    x = jax.random.normal(k_x, (batch, input_size), dtype=jnp.float32)
    params = init_params(k_p, input_size, num_classes)

    logits = simple_nn_forward(x, *params)
    jax.block_until_ready(logits)

    # Pure-JAX reference check of the same math.
    w1, b1, w2, b2, w3, b3 = params
    ref = jnp.maximum(x @ w1 + b1, 0.0)
    ref = jnp.maximum(ref @ w2 + b2, 0.0)
    ref = ref @ w3 + b3
    assert logits.shape == (batch, num_classes)
    assert jnp.allclose(logits, ref, atol=1e-5, rtol=1e-5)

    print("KERNEL_OK")
</pallas_src>

<mosaic_0001>
module attributes {stable_mosaic.version = 11 : i64} {
  func.func @_mlp_kernel(%arg0: i32, %arg1: memref<8x32xf32, #tpu.memory_space<vmem>>, %arg2: memref<32x128xf32, #tpu.memory_space<vmem>>, %arg3: memref<1x128xf32, #tpu.memory_space<vmem>>, %arg4: memref<128x128xf32, #tpu.memory_space<vmem>>, %arg5: memref<1x128xf32, #tpu.memory_space<vmem>>, %arg6: memref<128x128xf32, #tpu.memory_space<vmem>>, %arg7: memref<1x128xf32, #tpu.memory_space<vmem>>, %arg8: memref<8x128xf32, #tpu.memory_space<vmem>>) attributes {dimension_semantics = [#tpu.dimension_semantics<parallel>], iteration_bounds = array<i64: 1>, scalar_prefetch = 0 : i64, scratch_operands = 0 : i64, tpu.core_type = #tpu.core_type<tc>, window_params = [{transform_indices = @transform_0, window_bounds = array<i64: 8, 32>}, {pipeline_mode = #tpu.pipeline_mode<synchronous>, transform_indices = @transform_1, window_bounds = array<i64: 32, 128>}, {pipeline_mode = #tpu.pipeline_mode<synchronous>, transform_indices = @transform_2, window_bounds = array<i64: 1, 128>}, {pipeline_mode = #tpu.pipeline_mode<synchronous>, transform_indices = @transform_3, window_bounds = array<i64: 128, 128>}, {pipeline_mode = #tpu.pipeline_mode<synchronous>, transform_indices = @transform_4, window_bounds = array<i64: 1, 128>}, {pipeline_mode = #tpu.pipeline_mode<synchronous>, transform_indices = @transform_5, window_bounds = array<i64: 128, 128>}, {pipeline_mode = #tpu.pipeline_mode<synchronous>, transform_indices = @transform_6, window_bounds = array<i64: 1, 128>}, {transform_indices = @transform_7, window_bounds = array<i64: 8, 128>}]} {
    %c0 = arith.constant 0 : index
    %c0_0 = arith.constant 0 : index
    %0 = vector.load %arg3[%c0, %c0_0] : memref<1x128xf32, #tpu.memory_space<vmem>>, vector<1x128xf32>
    %c0_1 = arith.constant 0 : index
    %c0_2 = arith.constant 0 : index
    %1 = vector.load %arg5[%c0_1, %c0_2] : memref<1x128xf32, #tpu.memory_space<vmem>>, vector<1x128xf32>
    %c0_3 = arith.constant 0 : index
    %c0_4 = arith.constant 0 : index
    %2 = vector.load %arg7[%c0_3, %c0_4] : memref<1x128xf32, #tpu.memory_space<vmem>>, vector<1x128xf32>
    %c0_5 = arith.constant 0 : index
    %c0_6 = arith.constant 0 : index
    %3 = vector.load %arg1[%c0_5, %c0_6] : memref<8x32xf32, #tpu.memory_space<vmem>>, vector<8x32xf32>
    %c0_7 = arith.constant 0 : index
    %c0_8 = arith.constant 0 : index
    %4 = vector.load %arg2[%c0_7, %c0_8] : memref<32x128xf32, #tpu.memory_space<vmem>>, vector<32x128xf32>
    %cst = arith.constant dense<0.000000e+00> : vector<8x128xf32>
    %5 = tpu.matmul %3, %4, %cst {dimension_numbers = #tpu.dot_dimension_numbers<[1], [0], [0], [1], [0, 0, 1, 1], [], []>} : vector<8x32xf32>, vector<32x128xf32>, vector<8x128xf32> -> vector<8x128xf32>
    %6 = vector.broadcast %0 : vector<1x128xf32> to vector<8x128xf32>
    %7 = arith.addf %5, %6 : vector<8x128xf32>
    %cst_9 = arith.constant 0.000000e+00 : f32
    %8 = vector.broadcast %cst_9 : f32 to vector<8x128xf32>
    %9 = arith.maximumf %7, %8 : vector<8x128xf32>
    %c0_10 = arith.constant 0 : index
    %c0_11 = arith.constant 0 : index
    %10 = vector.load %arg4[%c0_10, %c0_11] : memref<128x128xf32, #tpu.memory_space<vmem>>, vector<128x128xf32>
    %cst_12 = arith.constant dense<0.000000e+00> : vector<8x128xf32>
    %11 = tpu.matmul %9, %10, %cst_12 {dimension_numbers = #tpu.dot_dimension_numbers<[1], [0], [0], [1], [0, 0, 1, 1], [], []>} : vector<8x128xf32>, vector<128x128xf32>, vector<8x128xf32> -> vector<8x128xf32>
    %12 = vector.broadcast %1 : vector<1x128xf32> to vector<8x128xf32>
    %13 = arith.addf %11, %12 : vector<8x128xf32>
    %cst_13 = arith.constant 0.000000e+00 : f32
    %14 = vector.broadcast %cst_13 : f32 to vector<8x128xf32>
    %15 = arith.maximumf %13, %14 : vector<8x128xf32>
    %c0_14 = arith.constant 0 : index
    %c0_15 = arith.constant 0 : index
    %16 = vector.load %arg6[%c0_14, %c0_15] : memref<128x128xf32, #tpu.memory_space<vmem>>, vector<128x128xf32>
    %cst_16 = arith.constant dense<0.000000e+00> : vector<8x128xf32>
    %17 = tpu.matmul %15, %16, %cst_16 {dimension_numbers = #tpu.dot_dimension_numbers<[1], [0], [0], [1], [0, 0, 1, 1], [], []>} : vector<8x128xf32>, vector<128x128xf32>, vector<8x128xf32> -> vector<8x128xf32>
    %18 = vector.broadcast %2 : vector<1x128xf32> to vector<8x128xf32>
    %19 = arith.addf %17, %18 : vector<8x128xf32>
    %c0_17 = arith.constant 0 : index
    %c0_18 = arith.constant 0 : index
    %20 = vector.load %arg8[%c0_17, %c0_18] : memref<8x128xf32, #tpu.memory_space<vmem>>, vector<8x128xf32>
    tpu.vector_store %arg8[%c0_17, %c0_18], %19 {strides = array<i32>} : memref<8x128xf32, #tpu.memory_space<vmem>>, vector<8x128xf32>,
    return
  }
  func.func @transform_0(%arg0: i32) -> (i32, i32) {
    %c0_i32 = arith.constant 0 : i32
    %c0_i32_0 = arith.constant 0 : i32
    return %arg0, %c0_i32 : i32, i32
  }
  func.func @transform_1(%arg0: i32) -> (i32, i32) {
    %c0_i32 = arith.constant 0 : i32
    %c0_i32_0 = arith.constant 0 : i32
    %c0_i32_1 = arith.constant 0 : i32
    return %c0_i32, %c0_i32_0 : i32, i32
  }
  func.func @transform_2(%arg0: i32) -> (i32, i32) {
    %c0_i32 = arith.constant 0 : i32
    %c0_i32_0 = arith.constant 0 : i32
    %c0_i32_1 = arith.constant 0 : i32
    return %c0_i32, %c0_i32_0 : i32, i32
  }
  func.func @transform_3(%arg0: i32) -> (i32, i32) {
    %c0_i32 = arith.constant 0 : i32
    %c0_i32_0 = arith.constant 0 : i32
    %c0_i32_1 = arith.constant 0 : i32
    return %c0_i32, %c0_i32_0 : i32, i32
  }
  func.func @transform_4(%arg0: i32) -> (i32, i32) {
    %c0_i32 = arith.constant 0 : i32
    %c0_i32_0 = arith.constant 0 : i32
    %c0_i32_1 = arith.constant 0 : i32
    return %c0_i32, %c0_i32_0 : i32, i32
  }
  func.func @transform_5(%arg0: i32) -> (i32, i32) {
    %c0_i32 = arith.constant 0 : i32
    %c0_i32_0 = arith.constant 0 : i32
    %c0_i32_1 = arith.constant 0 : i32
    return %c0_i32, %c0_i32_0 : i32, i32
  }
  func.func @transform_6(%arg0: i32) -> (i32, i32) {
    %c0_i32 = arith.constant 0 : i32
    %c0_i32_0 = arith.constant 0 : i32
    %c0_i32_1 = arith.constant 0 : i32
    return %c0_i32, %c0_i32_0 : i32, i32
  }
  func.func @transform_7(%arg0: i32) -> (i32, i32) {
    %c0_i32 = arith.constant 0 : i32
    %c0_i32_0 = arith.constant 0 : i32
    return %arg0, %c0_i32 : i32, i32
  }
}

</mosaic_0001>

<llo_original>
// kernel: tpu_custom_call.1
$region0: #{tpu_custom_call.1}
  #allocation0 [shape = 'u32[]', space=smem, size = 0x4, offset = 0x4, fixed_abs, tag = 'smem constant byte address 0x4 - core index']
  #allocation1 [shape = 'u32[72,128]{1,0:T(1,128)}', space=vmem, size = 0x9000, scoped, tag = 'internal scratch']
  %s0 = inlined_call_operand.hbm [shape: f32[8,32], index: 0, kind: input, shape index: {}]
  %s1 = inlined_call_operand.hbm [shape: f32[32,128], index: 1, kind: input, shape index: {}]
  %s2 = inlined_call_operand.vmem [shape: f32[1,128], index: 2, kind: input, shape index: {}]
  %s3 = inlined_call_operand.hbm [shape: f32[128,128], index: 3, kind: input, shape index: {}]
  %s4 = inlined_call_operand.vmem [shape: f32[1,128], index: 4, kind: input, shape index: {}]
  %s5 = inlined_call_operand.hbm [shape: f32[128,128], index: 5, kind: input, shape index: {}]
  %s6 = inlined_call_operand.vmem [shape: f32[1,128], index: 6, kind: input, shape index: {}]
  %s7 = inlined_call_operand.hbm [shape: f32[8,128], index: 7, kind: output, shape index: {}]
  %s8 = sld [smem:[#allocation0]]
  $region54: #{tpu_custom_call.1} parent=0
    _
  %s10 = ssub.s32 1, %s8
  %s11 = scalar_select 0, %s10, %s8
  $region1: #{tpu_custom_call.1} parent=0
    #allocation2 [shape = 'u8[4096]{0}', space=vmem, size = 0x1000, scoped, tag = 'input window, operand 0, single buffered']
    #allocation3 [shape = 's32[1]{0}', space=sflag, size = 0x4, scoped, tag = 'scoped memory for tpu_custom_call.1']
    #allocation4 [shape = 's32[1]{0}', space=sflag, size = 0x4, scoped, tag = 'scoped memory for tpu_custom_call.1']
    #allocation5 [shape = 'u8[16384]{0}', space=vmem, size = 0x4000, scoped, tag = 'input window, operand 1, single buffered']
    #allocation6 [shape = 's32[1]{0}', space=sflag, size = 0x4, scoped, tag = 'scoped memory for tpu_custom_call.1']
    #allocation7 [shape = 'u8[65536]{0}', space=vmem, size = 0x10000, scoped, tag = 'input window, operand 3, single buffered']
    #allocation8 [shape = 'u8[65536]{0}', space=vmem, size = 0x10000, scoped, tag = 'input window, operand 5, single buffered']
    #allocation9 [shape = 's32[1]{0}', space=sflag, size = 0x4, scoped, tag = 'scoped memory for tpu_custom_call.1']
    #allocation10 [shape = 'u8[4096]{0}', space=vmem, size = 0x1000, scoped, tag = 'output window, operand 0, single buffered']
    %12 = vsyncpa [#allocation3], 0
    %13 = vsyncpa [#allocation6], 0
    %14 = vsyncpa [#allocation9], 0
    %15 = vsyncpa [#allocation4], 0
    // Predicated region
    $region2: #{tpu_custom_call.1} parent=1 // pred_check
      _
    $region3: #{tpu_custom_call.1} parent=1 // pred_check_branch
      %17 = sbr.rel (0) target = $region5
    $region4: #{tpu_custom_call.1} parent=1 // pred_region
      %19 = vsyncadd [#allocation3], 0
      %s21 = sshll.u32 %s0, 4
      %s22 = int_to_ptr.hbm [resolvable:$true] %s21
      %s23 = sshll.u32 [#allocation2], 4
      %s24 = int_to_ptr.vmem [resolvable:$true] %s23
      %26 = dma.hbm_to_vmem [thread:$0]  %s22, 128, %s24, [#allocation3]
    $region5: #{tpu_custom_call.1} parent=1 // pred_fallthru
      _
    // Predicated region
    $region6: #{tpu_custom_call.1} parent=1 // pred_check
      _
    $region7: #{tpu_custom_call.1} parent=1 // pred_check_branch
      %28 = sbr.rel (0) target = $region9
    $region8: #{tpu_custom_call.1} parent=1 // pred_region
      %30 = vsyncadd [#allocation6], 0
      %s31 = sshll.u32 %s1, 4
      %s32 = int_to_ptr.hbm [resolvable:$true] %s31
      %s33 = sshll.u32 [#allocation5], 4
      %s34 = int_to_ptr.vmem [resolvable:$true] %s33
      %39 = dma.hbm_to_vmem [thread:$0]  %s32, 512, %s34, [#allocation6], 128, 128, 8
    $region9: #{tpu_custom_call.1} parent=1 // pred_fallthru
      _
    // Predicated region
    $region10: #{tpu_custom_call.1} parent=1 // pred_check
      _
    $region11: #{tpu_custom_call.1} parent=1 // pred_check_branch
      %41 = sbr.rel (0) target = $region13
    $region12: #{tpu_custom_call.1} parent=1 // pred_region
      _
    $region13: #{tpu_custom_call.1} parent=1 // pred_fallthru
      _
    // Predicated region
    $region14: #{tpu_custom_call.1} parent=1 // pred_check
      _
    $region15: #{tpu_custom_call.1} parent=1 // pred_check_branch
      %43 = sbr.rel (0) target = $region17
    $region16: #{tpu_custom_call.1} parent=1 // pred_region
      %45 = vsyncadd [#allocation6], 0
      %s46 = sshll.u32 %s3, 4
      %s47 = int_to_ptr.hbm [resolvable:$true] %s46
      %s48 = sshll.u32 [#allocation7], 4
      %s49 = int_to_ptr.vmem [resolvable:$true] %s48
      %54 = dma.hbm_to_vmem [thread:$0]  %s47, 2048, %s49, [#allocation6], 128, 128, 8
    $region17: #{tpu_custom_call.1} parent=1 // pred_fallthru
      _
    // Predicated region
    $region18: #{tpu_custom_call.1} parent=1 // pred_check
      _
    $region19: #{tpu_custom_call.1} parent=1 // pred_check_branch
      %56 = sbr.rel (0) target = $region21
    $region20: #{tpu_custom_call.1} parent=1 // pred_region
      _
    $region21: #{tpu_custom_call.1} parent=1 // pred_fallthru
      _
    // Predicated region
    $region22: #{tpu_custom_call.1} parent=1 // pred_check
      _
    $region23: #{tpu_custom_call.1} parent=1 // pred_check_branch
      %58 = sbr.rel (0) target = $region25
    $region24: #{tpu_custom_call.1} parent=1 // pred_region
      %60 = vsyncadd [#allocation9], 0
      %s61 = sshll.u32 %s5, 4
      %s62 = int_to_ptr.hbm [resolvable:$true] %s61
      %s63 = sshll.u32 [#allocation8], 4
      %s64 = int_to_ptr.vmem [resolvable:$true] %s63
      %69 = dma.hbm_to_vmem [thread:$0]  %s62, 2048, %s64, [#allocation9], 128, 128, 8
    $region25: #{tpu_custom_call.1} parent=1 // pred_fallthru
      _
    // Predicated region
    $region26: #{tpu_custom_call.1} parent=1 // pred_check
      _
    $region27: #{tpu_custom_call.1} parent=1 // pred_check_branch
      %71 = sbr.rel (0) target = $region29
    $region28: #{tpu_custom_call.1} parent=1 // pred_region
      _
    $region29: #{tpu_custom_call.1} parent=1 // pred_fallthru
      _
    // Predicated region
    $region30: #{tpu_custom_call.1} parent=1 // pred_check
      _
    $region31: #{tpu_custom_call.1} parent=1 // pred_check_branch
      %73 = sbr.rel (0) target = $region33
    $region32: #{tpu_custom_call.1} parent=1 // pred_region
      %75 = dma.done [#allocation3], 128
    $region33: #{tpu_custom_call.1} parent=1 // pred_fallthru
      _
    // Predicated region
    $region34: #{tpu_custom_call.1} parent=1 // pred_check
      _
    $region35: #{tpu_custom_call.1} parent=1 // pred_check_branch
      %77 = sbr.rel (0) target = $region37
    $region36: #{tpu_custom_call.1} parent=1 // pred_region
      %79 = dma.done [#allocation6], 512
    $region37: #{tpu_custom_call.1} parent=1 // pred_fallthru
      _
    // Predicated region
    $region38: #{tpu_custom_call.1} parent=1 // pred_check
      _
    $region39: #{tpu_custom_call.1} parent=1 // pred_check_branch
      %81 = sbr.rel (0) target = $region41
    $region40: #{tpu_custom_call.1} parent=1 // pred_region
      %83 = dma.done [#allocation6], 2048
    $region41: #{tpu_custom_call.1} parent=1 // pred_fallthru
      _
    // Predicated region
    $region42: #{tpu_custom_call.1} parent=1 // pred_check
      _
    $region43: #{tpu_custom_call.1} parent=1 // pred_check_branch
      %85 = sbr.rel (0) target = $region45
    $region44: #{tpu_custom_call.1} parent=1 // pred_region
      %87 = dma.done [#allocation9], 2048
    $region45: #{tpu_custom_call.1} parent=1 // pred_fallthru
      _
    %v88 = vld [vmem:[%s2] sm:$0x1]
    %v89 = vld [vmem:[%s4] sm:$0x1]
    %v90 = vld [vmem:[%s6] sm:$0x1]
    %v91 = vld [vmem:[#allocation2] sm:$0xff]
    %v92 = vld [vmem:[#allocation5] sm:$0xff]
    %v93 = vld [vmem:[#allocation5 + $0x8] sm:$0xff]
    %v94 = vld [vmem:[#allocation5 + $0x10] sm:$0xff]
    %v95 = vld [vmem:[#allocation5 + $0x18] sm:$0xff]
    %v97 = vperm.slane %v88, 0
    %vm99 = vcmask 261120
    %v101 = vsel %vm99, %v91, 0
    %103 = vmatpush.msra.mxu0 0.0
    %104 = vmatpush.msra.mxu0 0.0
    %105 = vmatpush.msra.mxu0 0.0
    %106 = vmatpush.msra.mxu0 0.0
    %107 = vmatpush.msra.mxu0 0.0
    %108 = vmatpush.msra.mxu0 0.0
    %109 = vmatpush.msra.mxu0 0.0
    %110 = vmatpush.msra.mxu0 0.0
    %111 = vmatpush.msra.mxu0 0.0
    %112 = vmatpush.msra.mxu0 0.0
    %113 = vmatpush.msra.mxu0 0.0
    %114 = vmatpush.msra.mxu0 0.0
    %115 = vmatpush.msra.mxu0 %v95
    %116 = vmatpush.msra.mxu0 %v94
    %117 = vmatpush.msra.mxu0 %v93
    %118 = vmatpush.msra.mxu0 %v92
    %119 = vmatmul.f32.gmra.mxu0 %v101
    %v120 = vpop.f32.mrf.mxu0
    %v121 = vadd.f32 %v97, %v120
    %122 = vdwg.mxu0
    %v123 = vmax.f32 %v121, 0.0
    %v124 = vld [vmem:[#allocation7] sm:$0xff]
    %v125 = vld [vmem:[#allocation7 + $0x8] sm:$0xff]
    %v126 = vld [vmem:[#allocation7 + $0x10] sm:$0xff]
    %v127 = vld [vmem:[#allocation7 + $0x18] sm:$0xff]
    %v128 = vld [vmem:[#allocation7 + $0x20] sm:$0xff]
    %v129 = vld [vmem:[#allocation7 + $0x28] sm:$0xff]
    %v130 = vld [vmem:[#allocation7 + $0x30] sm:$0xff]
    %v131 = vld [vmem:[#allocation7 + $0x38] sm:$0xff]
    %v132 = vld [vmem:[#allocation7 + $0x40] sm:$0xff]
    %v133 = vld [vmem:[#allocation7 + $0x48] sm:$0xff]
    %v134 = vld [vmem:[#allocation7 + $0x50] sm:$0xff]
    %v135 = vld [vmem:[#allocation7 + $0x58] sm:$0xff]
    %v136 = vld [vmem:[#allocation7 + $0x60] sm:$0xff]
    %v137 = vld [vmem:[#allocation7 + $0x68] sm:$0xff]
    %v138 = vld [vmem:[#allocation7 + $0x70] sm:$0xff]
    %v139 = vld [vmem:[#allocation7 + $0x78] sm:$0xff]
    %v141 = vperm.slane %v89, 0
    %143 = vmatpush.msra.mxu0 %v139
    %144 = vmatpush.msra.mxu0 %v138
    %145 = vmatpush.msra.mxu0 %v137
    %146 = vmatpush.msra.mxu0 %v136
    %147 = vmatpush.msra.mxu0 %v135
    %148 = vmatpush.msra.mxu0 %v134
    %149 = vmatpush.msra.mxu0 %v133
    %150 = vmatpush.msra.mxu0 %v132
    %151 = vmatpush.msra.mxu0 %v131
    %152 = vmatpush.msra.mxu0 %v130
    %153 = vmatpush.msra.mxu0 %v129
    %154 = vmatpush.msra.mxu0 %v128
    %155 = vmatpush.msra.mxu0 %v127
    %156 = vmatpush.msra.mxu0 %v126
    %157 = vmatpush.msra.mxu0 %v125
    %158 = vmatpush.msra.mxu0 %v124
    %159 = vmatmul.f32.gmra.mxu0 %v123
    %v160 = vpop.f32.mrf.mxu0
    %v161 = vadd.f32 %v141, %v160
    %162 = vdwg.mxu0
    %v163 = vmax.f32 %v161, 0.0
    %v164 = vld [vmem:[#allocation8] sm:$0xff]
    %v165 = vld [vmem:[#allocation8 + $0x8] sm:$0xff]
    %v166 = vld [vmem:[#allocation8 + $0x10] sm:$0xff]
    %v167 = vld [vmem:[#allocation8 + $0x18] sm:$0xff]
    %v168 = vld [vmem:[#allocation8 + $0x20] sm:$0xff]
    %v169 = vld [vmem:[#allocation8 + $0x28] sm:$0xff]
    %v170 = vld [vmem:[#allocation8 + $0x30] sm:$0xff]
    %v171 = vld [vmem:[#allocation8 + $0x38] sm:$0xff]
    %v172 = vld [vmem:[#allocation8 + $0x40] sm:$0xff]
    %v173 = vld [vmem:[#allocation8 + $0x48] sm:$0xff]
    %v174 = vld [vmem:[#allocation8 + $0x50] sm:$0xff]
    %v175 = vld [vmem:[#allocation8 + $0x58] sm:$0xff]
    %v176 = vld [vmem:[#allocation8 + $0x60] sm:$0xff]
    %v177 = vld [vmem:[#allocation8 + $0x68] sm:$0xff]
    %v178 = vld [vmem:[#allocation8 + $0x70] sm:$0xff]
    %v179 = vld [vmem:[#allocation8 + $0x78] sm:$0xff]
    %v181 = vperm.slane %v90, 0
    %183 = vmatpush.msra.mxu0 %v179
    %184 = vmatpush.msra.mxu0 %v178
    %185 = vmatpush.msra.mxu0 %v177
    %186 = vmatpush.msra.mxu0 %v176
    %187 = vmatpush.msra.mxu0 %v175
    %188 = vmatpush.msra.mxu0 %v174
    %189 = vmatpush.msra.mxu0 %v173
    %190 = vmatpush.msra.mxu0 %v172
    %191 = vmatpush.msra.mxu0 %v171
    %192 = vmatpush.msra.mxu0 %v170
    %193 = vmatpush.msra.mxu0 %v169
    %194 = vmatpush.msra.mxu0 %v168
    %195 = vmatpush.msra.mxu0 %v167
    %196 = vmatpush.msra.mxu0 %v166
    %197 = vmatpush.msra.mxu0 %v165
    %198 = vmatpush.msra.mxu0 %v164
    %199 = vmatmul.f32.gmra.mxu0 %v163
    %v200 = vpop.f32.mrf.mxu0
    %v201 = vadd.f32 %v181, %v200
    %202 = vdwg.mxu0
    %203 = vst [vmem:[#allocation10] sm:$0xff] %v201
    // Predicated region
    $region46: #{tpu_custom_call.1} parent=1 // pred_check
      _
    $region47: #{tpu_custom_call.1} parent=1 // pred_check_branch
      %205 = sbr.rel (0) target = $region49
    $region48: #{tpu_custom_call.1} parent=1 // pred_region
      %207 = vsyncadd [#allocation4], 0
      %s209 = sshll.u32 [#allocation10], 4
      %s210 = int_to_ptr.vmem [resolvable:$true] %s209
      %s211 = sshll.u32 %s7, 4
      %s212 = int_to_ptr.hbm [resolvable:$true] %s211
      %214 = dma.vmem_to_hbm [thread:$0]  %s210, 128, %s212, [#allocation4]
    $region49: #{tpu_custom_call.1} parent=1 // pred_fallthru
      _
    // Predicated region
    $region50: #{tpu_custom_call.1} parent=1 // pred_check
      _
    $region51: #{tpu_custom_call.1} parent=1 // pred_check_branch
      %216 = sbr.rel (0) target = $region53
    $region52: #{tpu_custom_call.1} parent=1 // pred_region
      %218 = dma.done [#allocation4], 128
    $region53: #{tpu_custom_call.1} parent=1 // pred_fallthru
      _
    %219 = vsyncpa [#allocation3], 1
    %220 = vsyncpa [#allocation6], 1
    %221 = vsyncpa [#allocation9], 1
    %222 = vsyncpa [#allocation4], 1

</llo_original>
